<compile_context>
chip_gen: v7x
topology: tpu7x:2x2x1
jax: 0.10.0
libtpu: 0.0.40
codegen_flags: <defaults>
</compile_context>

<pallas_src>
import functools
import math

import jax
import jax.numpy as jnp
from jax import lax
from jax.experimental import pallas as pl
from jax.experimental.pallas import tpu as pltpu


# ----------------------------------------------------------------------------
# Generation-aware VMEM budget
# ----------------------------------------------------------------------------
def _default_vmem_limit():
    cap = None
    try:
        info = pltpu.get_tpu_info()
        cap = getattr(info, "vmem_capacity_bytes", None)
    except Exception:
        cap = None
    if not cap or cap <= 0:
        cap = 64 * 1024 * 1024          # conservative (v7x per-core size)
    # leave headroom for compiler temporaries; never request more than 96 MiB
    return int(min(cap * 3 // 4, 96 * 1024 * 1024))


_VMEM_LIMIT = _default_vmem_limit()
_MATMUL_BUDGET = max(int(_VMEM_LIMIT * 0.7), 8 * 1024 * 1024)


def _tile(dim, target, align):
    """Largest tile <= target that is a multiple of `align` and divides `dim`.
    Falls back to the full dimension (always legal for BlockSpec)."""
    if dim <= target or dim % align != 0:
        return dim
    t = min(target, dim)
    t -= t % align
    while t >= align:
        if dim % t == 0:
            return t
        t -= align
    return dim


def _plan_linear(M, N, K, itemsize, want_ln_fusion):
    """Pick (tm, tn, tk, ln_fused) for the tiled matmul under the VMEM budget."""
    budget = _MATMUL_BUDGET
    malign = 16 if itemsize < 4 else 8

    def usage(tm, tn, tk, nk, fused):
        vm = 2 * itemsize * (tm * tk + tk * tn + 2 * tm * tn + 4 * tn + 2 * tk)
        if nk > 1:
            vm += 4 * tm * tn                       # f32 accumulator
        if fused:
            vm += itemsize * tm * tk                # LN(x) scratch
            vm += 12 * tm * tk                      # f32 LN temporaries (estimate)
        return vm

    if want_ln_fusion:
        for mt, nt in ((512, 512), (384, 512), (512, 384), (384, 384),
                       (256, 512), (256, 256), (128, 256), (128, 128)):
            tm = _tile(M, mt, malign)
            tn = _tile(N, nt, 128)
            if usage(tm, tn, K, 1, True) <= budget:
                return tm, tn, K, True
        # cannot afford prologue fusion -> fall through to the generic plan

    for mt, nt, kt in ((512, 512, None), (512, 512, 4096), (512, 512, 2048),
                       (512, 256, None), (256, 512, None), (512, 512, 1024),
                       (512, 256, 2048), (256, 256, None), (256, 256, 2048),
                       (256, 256, 1024), (128, 256, 1024), (128, 128, 512),
                       (128, 128, 256)):
        tm = _tile(M, mt, malign)
        tn = _tile(N, nt, 128)
        tk = K if kt is None else _tile(K, kt, 128)
        nk = K // tk
        if usage(tm, tn, tk, nk, False) <= budget:
            return tm, tn, tk, False
    return _tile(M, 128, malign), _tile(N, 128, 128), _tile(K, 512, 128), False


# ----------------------------------------------------------------------------
# Tiled linear: optional fused LN+modulation prologue, activation / add /
# residual+gate epilogue.  f32 accumulation, bf16 MXU operands.
# ----------------------------------------------------------------------------
def _linear_kernel(*refs, activation, gated, has_add, fuse_ln, multi_k, eps):
    it = iter(refs)
    x_ref = next(it)
    w_ref = next(it)
    b_ref = next(it)
    lns_ref = next(it) if fuse_ln else None
    lnh_ref = next(it) if fuse_ln else None
    add_ref = next(it) if has_add else None
    g_ref = next(it) if gated else None
    r_ref = next(it) if gated else None
    o_ref = next(it)
    xln_ref = next(it) if fuse_ln else None
    acc_ref = next(it) if multi_k else None

    if fuse_ln:
        # LayerNorm(affine=False) + (1+scale)*xn + shift, computed once per
        # (i, b) row-block (j == 0) and cached in VMEM for all N tiles.
        @pl.when(pl.program_id(2) == 0)
        def _():
            xf = x_ref[0].astype(jnp.float32)
            mu = jnp.mean(xf, axis=-1, keepdims=True)
            xc = xf - mu
            var = jnp.mean(xc * xc, axis=-1, keepdims=True)
            xn = xc * lax.rsqrt(var + eps)
            xln_ref[...] = ((1.0 + lns_ref[0].astype(jnp.float32)) * xn
                            + lnh_ref[0].astype(jnp.float32)).astype(xln_ref.dtype)

        x = xln_ref[...]
    else:
        x = x_ref[0]

    part = jnp.dot(x, w_ref[...], preferred_element_type=jnp.float32)

    def epilogue(acc):
        y = acc + b_ref[0].astype(jnp.float32)
        if activation == "silu":
            y = y * jax.nn.sigmoid(y)
        elif activation == "gelu_tanh":
            c = math.sqrt(2.0 / math.pi)
            y = 0.5 * y * (1.0 + jnp.tanh(c * (y + 0.044715 * y * y * y)))
        if has_add:
            y = y + add_ref[0].astype(jnp.float32)
        if gated:
            y = r_ref[0].astype(jnp.float32) + g_ref[0].astype(jnp.float32) * y
        o_ref[0] = y.astype(o_ref.dtype)

    if multi_k:
        k = pl.program_id(3)

        @pl.when(k == 0)
        def _():
            acc_ref[...] = jnp.zeros_like(acc_ref)

        acc_ref[...] += part

        @pl.when(k == pl.num_programs(3) - 1)
        def _():
            epilogue(acc_ref[...])
    else:
        epilogue(part)


def linear(x, w, b=None, activation=None, gate=None, residual=None, add=None,
           ln_scale=None, ln_shift=None, out_dtype=None, eps=1e-6):
    """y = [LNmod](x) @ w + b, with optional fused activation, `+ add`, and
    `residual + gate * y` epilogue.  x: (B, L, K) or (L, K); w: (K, N)."""
    squeeze = x.ndim == 2
    x3 = x[None] if squeeze else x
    B, L, K = x3.shape
    N = w.shape[1]
    if b is None:
        b = jnp.zeros((N,), jnp.float32)
    out_dtype = out_dtype or x3.dtype

    itemsize = jnp.dtype(x3.dtype).itemsize
    want_ln = ln_scale is not None
    tm, tn, tk, fuse_ln = _plan_linear(L, N, K, itemsize, want_ln)
    if want_ln and not fuse_ln:
        # could not keep the full feature dim resident -> separate LN kernel
        x3 = layernorm_modulate(x3, ln_scale, ln_shift, eps)
    nk = K // tk
    multi_k = nk > 1
    gated = gate is not None
    has_add = add is not None

    grid = (L // tm, B, N // tn, nk)

    in_arrays = [x3, w, b.reshape(1, 1, N)]
    in_specs = [
        pl.BlockSpec((1, tm, tk), lambda i, b_, j, k: (b_, i, k)),
        pl.BlockSpec((tk, tn), lambda i, b_, j, k: (k, j)),
        pl.BlockSpec((1, 1, tn), lambda i, b_, j, k: (0, 0, j)),
    ]
    if fuse_ln:
        in_arrays += [ln_scale.reshape(B, 1, K), ln_shift.reshape(B, 1, K)]
        in_specs += [pl.BlockSpec((1, 1, K), lambda i, b_, j, k: (b_, 0, 0))] * 2
    if has_add:
        in_arrays.append(add)
        in_specs.append(pl.BlockSpec((1, tm, tn), lambda i, b_, j, k: (b_, i, j)))
    if gated:
        in_arrays += [gate.reshape(B, 1, N), residual]
        in_specs += [
            pl.BlockSpec((1, 1, tn), lambda i, b_, j, k: (b_, 0, j)),
            pl.BlockSpec((1, tm, tn), lambda i, b_, j, k: (b_, i, j)),
        ]

    scratch = []
    if fuse_ln:
        scratch.append(pltpu.VMEM((tm, K), x3.dtype))
    if multi_k:
        scratch.append(pltpu.VMEM((tm, tn), jnp.float32))

    # N axis must stay on one core when the LN scratch is cached across it.
    semantics = (("parallel", "parallel", "arbitrary", "arbitrary") if fuse_ln
                 else ("parallel", "parallel", "parallel", "arbitrary"))

    out = pl.pallas_call(
        functools.partial(_linear_kernel, activation=activation, gated=gated,
                          has_add=has_add, fuse_ln=fuse_ln, multi_k=multi_k,
                          eps=eps),
        grid=grid,
        in_specs=in_specs,
        out_specs=pl.BlockSpec((1, tm, tn), lambda i, b_, j, k: (b_, i, j)),
        out_shape=jax.ShapeDtypeStruct((B, L, N), out_dtype),
        scratch_shapes=scratch,
        compiler_params=pltpu.CompilerParams(
            dimension_semantics=semantics,
            vmem_limit_bytes=_VMEM_LIMIT),
        cost_estimate=pl.CostEstimate(
            flops=2 * B * L * K * N,
            transcendentals=(B * L * N if activation else 0),
            bytes_accessed=(B * L * K + K * N
                            + B * L * N * (2 if gated else 1)
                            + (B * L * N if has_add else 0)) * itemsize),
    )(*in_arrays)
    return out[0] if squeeze else out


# ----------------------------------------------------------------------------
# Standalone LayerNorm(affine=False) + adaLN modulation (fallback only)
# ----------------------------------------------------------------------------
def _ln_mod_kernel(x_ref, scale_ref, shift_ref, o_ref, *, eps):
    x = x_ref[0].astype(jnp.float32)
    mean = jnp.mean(x, axis=-1, keepdims=True)
    xc = x - mean
    var = jnp.mean(xc * xc, axis=-1, keepdims=True)
    xn = xc * lax.rsqrt(var + eps)
    sc = scale_ref[0].astype(jnp.float32)
    sh = shift_ref[0].astype(jnp.float32)
    o_ref[0] = ((1.0 + sc) * xn + sh).astype(o_ref.dtype)


def layernorm_modulate(x, scale, shift, eps=1e-6):
    B, L, D = x.shape
    tl = _tile(L, 512, 8)
    xspec = pl.BlockSpec((1, tl, D), lambda b, i: (b, i, 0))
    mspec = pl.BlockSpec((1, 1, D), lambda b, i: (b, 0, 0))
    return pl.pallas_call(
        functools.partial(_ln_mod_kernel, eps=eps),
        grid=(B, L // tl),
        in_specs=[xspec, mspec, mspec],
        out_specs=xspec,
        out_shape=jax.ShapeDtypeStruct((B, L, D), x.dtype),
        compiler_params=pltpu.CompilerParams(
            dimension_semantics=("parallel", "parallel"),
            vmem_limit_bytes=_VMEM_LIMIT),
    )(x, scale.reshape(B, 1, D), shift.reshape(B, 1, D))


# ----------------------------------------------------------------------------
# Flash-style attention (online softmax, KV-tiled, lane-dense, masked padding)
# ----------------------------------------------------------------------------
def _flash_kernel(q_ref, k_ref, v_ref, o_ref, m_sc, l_sc, acc_sc,
                  *, kv_len, tkv, masked):
    ki = pl.program_id(3)

    @pl.when(ki == 0)
    def _():
        m_sc[...] = jnp.full_like(m_sc, -jnp.inf)
        l_sc[...] = jnp.zeros_like(l_sc)
        acc_sc[...] = jnp.zeros_like(acc_sc)

    q = q_ref[0]                               # (tq, D), already scaled by 1/sqrt(D)
    k = k_ref[0]                               # (tkv, D)
    v = v_ref[0]                               # (tkv, D)
    # contract on the last dim of both operands (no k.T relayout)
    s = lax.dot_general(q, k, (((1,), (1,)), ((), ())),
                        preferred_element_type=jnp.float32)
    if masked:
        col = ki * tkv + lax.broadcasted_iota(jnp.int32, s.shape, 1)
        s = jnp.where(col < kv_len, s, -jnp.inf)

    m_prev = m_sc[...]
    m_new = jnp.maximum(m_prev, s.max(axis=-1, keepdims=True))
    alpha = jnp.exp(m_prev - m_new)
    p = jnp.exp(s - m_new)
    l_sc[...] = alpha * l_sc[...] + p.sum(axis=-1, keepdims=True)
    acc_sc[...] = alpha * acc_sc[...] + jnp.dot(
        p.astype(v.dtype), v, preferred_element_type=jnp.float32)
    m_sc[...] = m_new

    @pl.when(ki == pl.num_programs(3) - 1)
    def _():
        o_ref[0] = (acc_sc[...] * pl.reciprocal(l_sc[...], approx=True)
                    ).astype(o_ref.dtype)


def _attn_tiles(L):
    for t in (512, 384, 256, 128):
        if L % t == 0:
            return t, L
    if L < 512:
        t = ((L + 7) // 8) * 8
        return t, t
    t = 256
    return t, ((L + t - 1) // t) * t


def sdpa(q, k, v):
    """q/k/v: (B, L, H, D), q pre-scaled by 1/sqrt(D).  Returns (B, L, H*D)."""
    B, L, H, D = q.shape
    t, L_pad = _attn_tiles(L)
    masked = L_pad != L
    dense = (D % 128 == 0)

    if masked:
        pad = ((0, 0), (0, L_pad - L), (0, 0), (0, 0))
        q, k, v = jnp.pad(q, pad), jnp.pad(k, pad), jnp.pad(v, pad)

    if dense:
        qf = q.reshape(B, L_pad, H * D)
        kf = k.reshape(B, L_pad, H * D)
        vf = v.reshape(B, L_pad, H * D)
        q_map = lambda qi, h, b, ki: (b, qi, h)
        kv_map = lambda qi, h, b, ki: (b, ki, h)
        out_shape = jax.ShapeDtypeStruct((B, L_pad, H * D), q.dtype)
    else:
        # fallback layout when head_dim is not lane-aligned
        qf = jnp.transpose(q, (0, 2, 1, 3)).reshape(B * H, L_pad, D)
        kf = jnp.transpose(k, (0, 2, 1, 3)).reshape(B * H, L_pad, D)
        vf = jnp.transpose(v, (0, 2, 1, 3)).reshape(B * H, L_pad, D)
        q_map = lambda qi, h, b, ki: (b * H + h, qi, 0)
        kv_map = lambda qi, h, b, ki: (b * H + h, ki, 0)
        out_shape = jax.ShapeDtypeStruct((B * H, L_pad, D), q.dtype)

    nq = nkv = L_pad // t
    out = pl.pallas_call(
        functools.partial(_flash_kernel, kv_len=L, tkv=t, masked=masked),
        grid=(nq, H, B, nkv),
        in_specs=[pl.BlockSpec((1, t, D), q_map),
                  pl.BlockSpec((1, t, D), kv_map),
                  pl.BlockSpec((1, t, D), kv_map)],
        out_specs=pl.BlockSpec((1, t, D), q_map),
        out_shape=out_shape,
        scratch_shapes=[pltpu.VMEM((t, 1), jnp.float32),
                        pltpu.VMEM((t, 1), jnp.float32),
                        pltpu.VMEM((t, D), jnp.float32)],
        compiler_params=pltpu.CompilerParams(
            dimension_semantics=("parallel", "parallel", "parallel", "arbitrary"),
            vmem_limit_bytes=_VMEM_LIMIT),
        cost_estimate=pl.CostEstimate(
            flops=4 * B * H * L_pad * L_pad * D,
            transcendentals=B * H * L_pad * L_pad,
            bytes_accessed=4 * B * H * L_pad * D * jnp.dtype(q.dtype).itemsize),
    )(qf, kf, vf)

    if dense:
        return out[:, :L] if masked else out
    out = out.reshape(B, H, L_pad, D)[:, :, :L]
    return jnp.transpose(out, (0, 2, 1, 3)).reshape(B, L, H * D)


# ----------------------------------------------------------------------------
# JAX glue (small / elementwise pieces)
# ----------------------------------------------------------------------------
def dense_small(x, w, b, activation=None):
    """Tiny vec-path matmuls stay in XLA (M == batch)."""
    y = jnp.dot(x.astype(jnp.float32), w.astype(jnp.float32),
                preferred_element_type=jnp.float32) + b.astype(jnp.float32)
    if activation == "silu":
        y = y * jax.nn.sigmoid(y)
    return y


def mlp_embedder(x, p):
    h = dense_small(x, p["in_w"], p["in_b"], activation="silu")
    return dense_small(h, p["out_w"], p["out_b"])


def timestep_embedding(t, dim, max_period=10000, time_factor=1000.0):
    t = time_factor * t
    half = dim // 2
    freqs = jnp.exp(-math.log(max_period) *
                    jnp.arange(half, dtype=jnp.float32) / half)
    args = t[:, None].astype(jnp.float32) * freqs[None]
    return jnp.concatenate([jnp.cos(args), jnp.sin(args)], axis=-1)


def rope(pos, dim, theta):
    scale = jnp.arange(0, dim, 2, dtype=jnp.float32) / dim
    omega = 1.0 / (theta ** scale)
    out = pos[..., None].astype(jnp.float32) * omega          # (B, L, dim/2)
    cos, sin = jnp.cos(out), jnp.sin(out)
    out = jnp.stack([cos, -sin, sin, cos], axis=-1)
    return out.reshape(*out.shape[:-1], 2, 2)                  # (B, L, dim/2, 2, 2)


def embed_nd(ids, axes_dim, theta):
    emb = jnp.concatenate(
        [rope(ids[..., i], axes_dim[i], theta) for i in range(ids.shape[-1])],
        axis=-3)
    return emb[:, :, None]                                     # (B, L, 1, D/2, 2, 2)


def apply_rope(xq, xk, freqs_cis, q_scale=1.0):
    """xq/xk: (B, L, H, D); head-major transpose intentionally avoided."""
    B, L, H, D = xq.shape
    xq_ = xq.astype(jnp.float32).reshape(B, L, H, -1, 1, 2)
    xk_ = xk.astype(jnp.float32).reshape(B, L, H, -1, 1, 2)
    xq_out = freqs_cis[..., 0] * xq_[..., 0] + freqs_cis[..., 1] * xq_[..., 1]
    xk_out = freqs_cis[..., 0] * xk_[..., 0] + freqs_cis[..., 1] * xk_[..., 1]
    return ((xq_out * q_scale).reshape(B, L, H, D).astype(xq.dtype),
            xk_out.reshape(B, L, H, D).astype(xk.dtype))


def rms_norm(x, scale, eps=1e-6):
    xf = x.astype(jnp.float32)
    rrms = lax.rsqrt(jnp.mean(xf * xf, axis=-1, keepdims=True) + eps)
    return (xf * rrms).astype(x.dtype) * scale.astype(x.dtype)


def split_qkv(qkv, num_heads):
    """(B, L, 3*H*D) -> three (B, L, H, D) tensors (no head-major transpose)."""
    B, L, threeHD = qkv.shape
    D = threeHD // (3 * num_heads)
    qkv = qkv.reshape(B, L, 3, num_heads, D)
    return qkv[:, :, 0], qkv[:, :, 1], qkv[:, :, 2]


def attention(q, k, v, pe):
    D = q.shape[-1]
    q, k = apply_rope(q, k, pe, q_scale=1.0 / math.sqrt(D))
    return sdpa(q, k, v)                                       # (B, L, H*D)


# ----------------------------------------------------------------------------
# Blocks
# ----------------------------------------------------------------------------
def double_block(img, txt, vec, pe, p, num_heads):
    Lt = txt.shape[1]
    svec = jax.nn.silu(vec)
    im_sh1, im_sc1, im_g1, im_sh2, im_sc2, im_g2 = jnp.split(
        dense_small(svec, p["img_mod_w"], p["img_mod_b"]), 6, axis=-1)
    tx_sh1, tx_sc1, tx_g1, tx_sh2, tx_sc2, tx_g2 = jnp.split(
        dense_small(svec, p["txt_mod_w"], p["txt_mod_b"]), 6, axis=-1)

    # qkv projections with the LayerNorm+modulation fused into the prologue
    img_qkv = linear(img, p["img_qkv_w"], p["img_qkv_b"],
                     ln_scale=im_sc1, ln_shift=im_sh1)
    img_q, img_k, img_v = split_qkv(img_qkv, num_heads)
    img_q = rms_norm(img_q, p["img_q_scale"])
    img_k = rms_norm(img_k, p["img_k_scale"])

    txt_qkv = linear(txt, p["txt_qkv_w"], p["txt_qkv_b"],
                     ln_scale=tx_sc1, ln_shift=tx_sh1)
    txt_q, txt_k, txt_v = split_qkv(txt_qkv, num_heads)
    txt_q = rms_norm(txt_q, p["txt_q_scale"])
    txt_k = rms_norm(txt_k, p["txt_k_scale"])

    q = jnp.concatenate([txt_q, img_q], axis=1)
    k = jnp.concatenate([txt_k, img_k], axis=1)
    v = jnp.concatenate([txt_v, img_v], axis=1)
    attn = attention(q, k, v, pe)                              # (B, L, H*D)
    txt_attn, img_attn = attn[:, :Lt], attn[:, Lt:]

    # residual + gate fused into the projection / mlp-out matmul epilogues
    img = linear(img_attn, p["img_proj_w"], p["img_proj_b"],
                 gate=im_g1, residual=img)
    img_h = linear(img, p["img_mlp0_w"], p["img_mlp0_b"],
                   ln_scale=im_sc2, ln_shift=im_sh2, activation="gelu_tanh")
    img = linear(img_h, p["img_mlp2_w"], p["img_mlp2_b"],
                 gate=im_g2, residual=img)

    txt = linear(txt_attn, p["txt_proj_w"], p["txt_proj_b"],
                 gate=tx_g1, residual=txt)
    txt_h = linear(txt, p["txt_mlp0_w"], p["txt_mlp0_b"],
                   ln_scale=tx_sc2, ln_shift=tx_sh2, activation="gelu_tanh")
    txt = linear(txt_h, p["txt_mlp2_w"], p["txt_mlp2_b"],
                 gate=tx_g2, residual=txt)
    return img, txt


def single_block(x, vec, pe, p, num_heads):
    mod = dense_small(jax.nn.silu(vec), p["mod_w"], p["mod_b"])
    shift, scale, gate = jnp.split(mod, 3, axis=-1)

    # lin1 is pre-split into qkv / mlp halves; LN+modulation fused into both
    qkv = linear(x, p["lin1_qkv_w"], p["lin1_qkv_b"],
                 ln_scale=scale, ln_shift=shift)
    mlp_act = linear(x, p["lin1_mlp_w"], p["lin1_mlp_b"],
                     ln_scale=scale, ln_shift=shift, activation="gelu_tanh")

    q, k, v = split_qkv(qkv, num_heads)
    q = rms_norm(q, p["q_scale"])
    k = rms_norm(k, p["k_scale"])
    attn = attention(q, k, v, pe)                              # (B, L, H*D)

    # out = x + gate * (attn @ W2a + gelu(mlp) @ W2b + b2)  -- no concat
    partial = linear(mlp_act, p["lin2_mlp_w"], None, out_dtype=jnp.float32)
    return linear(attn, p["lin2_attn_w"], p["lin2_b"],
                  add=partial, gate=gate, residual=x)


def last_layer(x, vec, p):
    mod = dense_small(jax.nn.silu(vec), p["ada_w"], p["ada_b"])
    shift, scale = jnp.split(mod, 2, axis=-1)
    return linear(x, p["lin_w"], p["lin_b"], ln_scale=scale, ln_shift=shift)


# ----------------------------------------------------------------------------
# Full forward
# ----------------------------------------------------------------------------
def step1x_forward(params, cfg, img, img_ids, txt, txt_ids, timesteps, y,
                   compute_dtype=jnp.bfloat16):
    img = linear(img.astype(compute_dtype), params["img_in_w"], params["img_in_b"])
    vec = mlp_embedder(timestep_embedding(timesteps, 256), params["time_in"])
    vec = vec + mlp_embedder(y, params["vector_in"])
    txt = linear(txt.astype(compute_dtype), params["txt_in_w"], params["txt_in_b"])
    ids = jnp.concatenate([txt_ids, img_ids], axis=1)
    pe = embed_nd(ids, cfg["axes_dim"], cfg["theta"])

    # TODO(synk): TeaCache skip branch (should_calculate / previous_residual)
    # is cross-step Python state; this implements the full-compute path.
    for bp in params["double_blocks"]:
        img, txt = double_block(img, txt, vec, pe, bp, cfg["num_heads"])
    x = jnp.concatenate([txt, img], axis=1)
    for bp in params["single_blocks"]:
        x = single_block(x, vec, pe, bp, cfg["num_heads"])
    img = x[:, txt.shape[1]:]
    return last_layer(img, vec, params["final"])


# ----------------------------------------------------------------------------
# Deterministic parameter init (weights stored bf16; lin1/lin2 pre-split,
# which is just an equivalent repacking of the PyTorch Linear weights).
# ----------------------------------------------------------------------------
class KeyGen:
    def __init__(self, key):
        self.key = key

    def __call__(self):
        self.key, sub = jax.random.split(self.key)
        return sub


def init_params(key, cfg, dtype=jnp.bfloat16):
    kg = KeyGen(key)
    H = cfg["hidden_size"]
    Dh = H // cfg["num_heads"]
    mlp = int(H * cfg["mlp_ratio"])

    def W(i, o, dt=dtype):
        return (0.02 * jax.random.normal(kg(), (i, o), jnp.float32)).astype(dt)

    def Bs(o):
        return jnp.zeros((o,), jnp.float32)

    def dblock():
        return dict(
            img_mod_w=W(H, 6 * H, jnp.float32), img_mod_b=Bs(6 * H),
            txt_mod_w=W(H, 6 * H, jnp.float32), txt_mod_b=Bs(6 * H),
            img_qkv_w=W(H, 3 * H), img_qkv_b=Bs(3 * H),
            txt_qkv_w=W(H, 3 * H), txt_qkv_b=Bs(3 * H),
            img_q_scale=jnp.ones((Dh,), jnp.float32),
            img_k_scale=jnp.ones((Dh,), jnp.float32),
            txt_q_scale=jnp.ones((Dh,), jnp.float32),
            txt_k_scale=jnp.ones((Dh,), jnp.float32),
            img_proj_w=W(H, H), img_proj_b=Bs(H),
            txt_proj_w=W(H, H), txt_proj_b=Bs(H),
            img_mlp0_w=W(H, mlp), img_mlp0_b=Bs(mlp),
            img_mlp2_w=W(mlp, H), img_mlp2_b=Bs(H),
            txt_mlp0_w=W(H, mlp), txt_mlp0_b=Bs(mlp),
            txt_mlp2_w=W(mlp, H), txt_mlp2_b=Bs(H),
        )

    def sblock():
        return dict(
            mod_w=W(H, 3 * H, jnp.float32), mod_b=Bs(3 * H),
            lin1_qkv_w=W(H, 3 * H), lin1_qkv_b=Bs(3 * H),
            lin1_mlp_w=W(H, mlp), lin1_mlp_b=Bs(mlp),
            lin2_attn_w=W(H, H), lin2_mlp_w=W(mlp, H), lin2_b=Bs(H),
            q_scale=jnp.ones((Dh,), jnp.float32),
            k_scale=jnp.ones((Dh,), jnp.float32),
        )

    return dict(
        img_in_w=W(cfg["in_channels"], H), img_in_b=Bs(H),
        txt_in_w=W(cfg["context_in_dim"], H), txt_in_b=Bs(H),
        time_in=dict(in_w=W(256, H, jnp.float32), in_b=Bs(H),
                     out_w=W(H, H, jnp.float32), out_b=Bs(H)),
        vector_in=dict(in_w=W(cfg["vec_in_dim"], H, jnp.float32), in_b=Bs(H),
                       out_w=W(H, H, jnp.float32), out_b=Bs(H)),
        double_blocks=[dblock() for _ in range(cfg["depth"])],
        single_blocks=[sblock() for _ in range(cfg["depth_single_blocks"])],
        final=dict(ada_w=W(H, 2 * H, jnp.float32), ada_b=Bs(2 * H),
                   lin_w=W(H, cfg["out_channels"]), lin_b=Bs(cfg["out_channels"])),
    )


# ----------------------------------------------------------------------------
if __name__ == "__main__":
    # Small but MXU/lane-aligned config: head_dim = 128 so the lane-dense
    # attention path is exercised.
    cfg = dict(
        in_channels=16, out_channels=16, hidden_size=256, num_heads=2,
        axes_dim=(32, 48, 48), theta=10000, vec_in_dim=24, context_in_dim=48,
        mlp_ratio=4.0, depth=2, depth_single_blocks=2, qkv_bias=True,
    )
    assert cfg["hidden_size"] % cfg["num_heads"] == 0
    assert sum(cfg["axes_dim"]) == cfg["hidden_size"] // cfg["num_heads"]

    B_, L_img, L_txt = 2, 16, 8
    root = jax.random.PRNGKey(0)
    k_p, k_img, k_txt, k_y, k_t, k_ids = jax.random.split(root, 6)

    params = init_params(k_p, cfg)

    img = jax.random.normal(k_img, (B_, L_img, cfg["in_channels"]), jnp.float32)
    txt = jax.random.normal(k_txt, (B_, L_txt, cfg["context_in_dim"]), jnp.float32)
    y = jax.random.normal(k_y, (B_, cfg["vec_in_dim"]), jnp.float32)
    timesteps = jax.random.uniform(k_t, (B_,), jnp.float32)
    hgrid = jnp.arange(4, dtype=jnp.float32)
    img_ids = jnp.stack(
        [jnp.zeros((4, 4), jnp.float32),
         jnp.broadcast_to(hgrid[:, None], (4, 4)),
         jnp.broadcast_to(hgrid[None, :], (4, 4))], axis=-1
    ).reshape(1, L_img, 3)
    img_ids = jnp.broadcast_to(img_ids, (B_, L_img, 3))
    txt_ids = jnp.zeros((B_, L_txt, 3), jnp.float32)

    out = step1x_forward(params, cfg, img, img_ids, txt, txt_ids, timesteps, y)
    out = jax.block_until_ready(out)
    assert out.shape == (B_, L_img, cfg["out_channels"]), out.shape
    assert bool(jnp.all(jnp.isfinite(out.astype(jnp.float32))))

    # Smoke test for the padded / masked attention path (L not a tile multiple).
    kq, kk, kv = jax.random.split(jax.random.PRNGKey(1), 3)
    Ls, Hs, Ds = 20, 2, 128
    qs = 0.1 * jax.random.normal(kq, (1, Ls, Hs, Ds), jnp.float32)
    ks = 0.1 * jax.random.normal(kk, (1, Ls, Hs, Ds), jnp.float32)
    vs = jax.random.normal(kv, (1, Ls, Hs, Ds), jnp.float32)
    sc = 1.0 / math.sqrt(Ds)
    got = jax.block_until_ready(sdpa(qs * sc, ks, vs))
    ref = jnp.einsum(
        "bhlm,bmhd->blhd",
        jax.nn.softmax(jnp.einsum("blhd,bmhd->bhlm", qs * sc, ks), axis=-1),
        vs).reshape(1, Ls, Hs * Ds)
    assert got.shape == ref.shape
    assert bool(jnp.allclose(got, ref, atol=2e-2, rtol=2e-2))

    print("KERNEL_OK")
</pallas_src>

<mosaic_0001>
module attributes {stable_mosaic.version = 11 : i64} {
  func.func @_linear_kernel(%arg0: i32, %arg1: i32, %arg2: i32, %arg3: i32, %arg4: memref<1x16x16xbf16, #tpu.memory_space<vmem>>, %arg5: memref<16x256xbf16, #tpu.memory_space<vmem>>, %arg6: memref<1x1x256xf32, #tpu.memory_space<vmem>>, %arg7: memref<1x16x256xbf16, #tpu.memory_space<vmem>>) attributes {dimension_semantics = [#tpu.dimension_semantics<parallel>, #tpu.dimension_semantics<parallel>, #tpu.dimension_semantics<parallel>, #tpu.dimension_semantics<arbitrary>], iteration_bounds = array<i64: 1, 2, 1, 1>, scalar_prefetch = 0 : i64, scratch_operands = 0 : i64, tpu.core_type = #tpu.core_type<tc>, window_params = [{transform_indices = @transform_0, window_bounds = array<i64: 1, 16, 16>}, {transform_indices = @transform_1, window_bounds = array<i64: 16, 256>}, {transform_indices = @transform_2, window_bounds = array<i64: 1, 1, 256>}, {transform_indices = @transform_3, window_bounds = array<i64: 1, 16, 256>}]} {
    %c0 = arith.constant 0 : index
    %c0_0 = arith.constant 0 : index
    %c0_1 = arith.constant 0 : index
    %0 = vector.load %arg4[%c0, %c0_0, %c0_1] : memref<1x16x16xbf16, #tpu.memory_space<vmem>>, vector<1x16x16xbf16>
    %1 = vector.shape_cast %0 : vector<1x16x16xbf16> to vector<16x16xbf16>
    %c0_2 = arith.constant 0 : index
    %c0_3 = arith.constant 0 : index
    %2 = vector.load %arg5[%c0_2, %c0_3] : memref<16x256xbf16, #tpu.memory_space<vmem>>, vector<16x256xbf16>
    %cst = arith.constant dense<0.000000e+00> : vector<16x256xf32>
    %3 = tpu.matmul %1, %2, %cst {dimension_numbers = #tpu.dot_dimension_numbers<[1], [0], [0], [1], [0, 0, 1, 1], [], []>} : vector<16x16xbf16>, vector<16x256xbf16>, vector<16x256xf32> -> vector<16x256xf32>
    %c0_4 = arith.constant 0 : index
    %c0_5 = arith.constant 0 : index
    %c0_6 = arith.constant 0 : index
    %4 = vector.load %arg6[%c0_4, %c0_5, %c0_6] : memref<1x1x256xf32, #tpu.memory_space<vmem>>, vector<1x1x256xf32>
    %5 = vector.shape_cast %4 : vector<1x1x256xf32> to vector<1x256xf32>
    %6 = vector.broadcast %5 : vector<1x256xf32> to vector<16x256xf32>
    %7 = arith.addf %3, %6 : vector<16x256xf32>
    %8 = arith.truncf %7 : vector<16x256xf32> to vector<16x256xbf16>
    %c0_7 = arith.constant 0 : index
    %c0_8 = arith.constant 0 : index
    %c0_9 = arith.constant 0 : index
    %9 = vector.load %arg7[%c0_7, %c0_8, %c0_9] : memref<1x16x256xbf16, #tpu.memory_space<vmem>>, vector<1x16x256xbf16>
    %10 = vector.shape_cast %9 : vector<1x16x256xbf16> to vector<16x256xbf16>
    %11 = vector.shape_cast %8 : vector<16x256xbf16> to vector<1x16x256xbf16>
    tpu.vector_store %arg7[%c0_7, %c0_8, %c0_9], %11 {strides = array<i32>} : memref<1x16x256xbf16, #tpu.memory_space<vmem>>, vector<1x16x256xbf16>,
    return
  }
  func.func @transform_0(%arg0: i32, %arg1: i32, %arg2: i32, %arg3: i32) -> (i32, i32, i32) {
    %c0_i32 = arith.constant 0 : i32
    return %arg1, %arg0, %arg3 : i32, i32, i32
  }
  func.func @transform_1(%arg0: i32, %arg1: i32, %arg2: i32, %arg3: i32) -> (i32, i32) {
    %c0_i32 = arith.constant 0 : i32
    return %arg3, %arg2 : i32, i32
  }
  func.func @transform_2(%arg0: i32, %arg1: i32, %arg2: i32, %arg3: i32) -> (i32, i32, i32) {
    %c0_i32 = arith.constant 0 : i32
    %c0_i32_0 = arith.constant 0 : i32
    %c0_i32_1 = arith.constant 0 : i32
    return %c0_i32, %c0_i32_0, %arg2 : i32, i32, i32
  }
  func.func @transform_3(%arg0: i32, %arg1: i32, %arg2: i32, %arg3: i32) -> (i32, i32, i32) {
    %c0_i32 = arith.constant 0 : i32
    return %arg1, %arg0, %arg2 : i32, i32, i32
  }
}

</mosaic_0001>

<llo_original>
// kernel: tpu_custom_call.1
$region0: #{tpu_custom_call.1}
  #allocation0 [shape = 'u32[]', space=smem, size = 0x4, offset = 0x4, fixed_abs, tag = 'smem constant byte address 0x4 - core index']
  #allocation1 [shape = 'u32[144,128]{1,0:T(1,128)}', space=vmem, size = 0x12000, scoped, tag = 'internal scratch']
  %s0 = inlined_call_operand.hbm [shape: bf16[2,16,16], index: 0, kind: input, shape index: {}]
  %s1 = inlined_call_operand.hbm [shape: bf16[16,256], index: 1, kind: input, shape index: {}]
  %s2 = inlined_call_operand.vmem [shape: f32[1,1,256], index: 2, kind: input, shape index: {}]
  %s3 = inlined_call_operand.hbm [shape: bf16[2,16,256], index: 3, kind: output, shape index: {}]
  %s4 = sld [smem:[#allocation0]]
  $region53: #{tpu_custom_call.1} parent=0
    _
  %s6 = ssub.s32 1, %s4
  %s7 = scalar_select 0, %s6, %s4
  $region1: #{tpu_custom_call.1} parent=0
    #allocation2 [shape = 'u8[8192]{0}', space=vmem, size = 0x2000, scoped, tag = 'input window, operand 0']
    #allocation3 [shape = 's32[2]{0}', space=sflag, size = 0x8, scoped, tag = 'scoped memory for tpu_custom_call.1']
    #allocation4 [shape = 's32[2]{0}', space=sflag, size = 0x8, scoped, tag = 'scoped memory for tpu_custom_call.1']
    #allocation5 [shape = 'u8[8192]{0}', space=vmem, size = 0x2000, scoped, tag = 'input window, operand 1, single buffered']
    #allocation6 [shape = 's32[1]{0}', space=sflag, size = 0x4, scoped, tag = 'scoped memory for tpu_custom_call.1']
    #allocation7 [shape = 'u8[16384]{0}', space=vmem, size = 0x4000, scoped, tag = 'output window, operand 0']
    %8 = vsyncpa [#allocation3], 0
    %s9 = scalar_lea.sflag [#allocation3], 1
    %10 = vsyncpa %s9, 0
    %11 = vsyncpa [#allocation6], 0
    %12 = vsyncpa [#allocation4], 0
    %s13 = scalar_lea.sflag [#allocation4], 1
    %14 = vsyncpa %s13, 0
    loop: start=0, step=1, limit=4
    $region2: #{tpu_custom_call.1} parent=1 // loop_pre_header
      _
    $region3: #{tpu_custom_call.1} parent=1 // loop_header
      %s16 = sphi 0, %s20
      %p17 = scmp.ge.s32.totalorder %s16, 4
      %s23 = sphi 0, %s49
      %s24 = sphi 0, %s45
      %s25 = sphi 0, %s41
      %s26 = sphi 0, %s37
      %s27 = sphi 0, %s23
      %s28 = sphi 0, %s24
      %s29 = sphi 0, %s25
      %s30 = sphi 0, %s26
      %s31 = sphi 0, %s27
      %s32 = sphi 0, %s28
      %s33 = sphi 0, %s29
      %s34 = sphi 0, %s30
      %s56 = sphi 0, %s58
      %s59 = sphi 0, %s56
      %s60 = sphi 0, %s59
      %s76 = sphi 0, %s60
      %s84 = sphi 0, %s86
      %s87 = sphi 0, %s84
      %s88 = sphi 0, %s87
      %s104 = sphi 0, %s88
      %s110 = sphi 0, %s112
      %s113 = sphi 0, %s110
      %s114 = sphi 0, %s113
      %s130 = sphi 0, %s114
      %s140 = sphi 0, %s142
      %s143 = sphi 0, %s140
      %s144 = sphi 0, %s143
      %s160 = sphi 0, %s144
    $region4: #{tpu_custom_call.1} parent=1 // loop_header_branch
      %19 = sbr.rel (%p17) target = $region8
    $region5: #{tpu_custom_call.1} parent=1 // loop_body
      %s21 = ssub.s32 %s16, 1
      %s22 = ssub.s32 %s16, 2
      %s35 = sadd.s32 1, %s26
      %p36 = scmp.ge.s32.totalorder %s35, 1
      %s37 = scalar_select %p36, 0, %s35
      %s38 = sadd.s32 1, %s25
      %s39 = scalar_select %p36, %s38, %s25
      %p40 = scmp.ge.s32.totalorder %s39, 1
      %s41 = scalar_select %p40, 0, %s39
      %s42 = sadd.s32 1, %s24
      %s43 = scalar_select %p40, %s42, %s24
      %p44 = scmp.ge.s32.totalorder %s43, 2
      %s45 = scalar_select %p44, 0, %s43
      %s46 = sadd.s32 1, %s23
      %s47 = scalar_select %p44, %s46, %s23
      %p48 = scmp.ge.s32.totalorder %s47, 1
      %s49 = scalar_select %p48, 0, %s47
      %s50 = ssub.s32 %s24, %s45
      %s51 = ssub.s32 %s23, %s49
      %s52 = sor.u32 %s50, %s51
      %s53 = ssub.s32 %s26, %s37
      %s54 = sor.u32 %s52, %s53
      %p55 = scmp.eq.s32.totalorder %s54, 0
      %s57 = sadd.s32 %s56, 1
      %s58 = scalar_select %p55, %s56, %s57
      %p61 = pneg %p55
      %p62 = scmp.eq.s32.totalorder %s16, 1
      %p63 = por %p61, %p62
      %p64 = scmp.ne.s32.totalorder %s56, %s59
      %p65 = scmp.eq.s32.totalorder %s16, 0
      %p66 = por %p64, %p65
      %p67 = scmp.ne.s32.totalorder %s56, %s59
      %p68 = scmp.eq.s32.totalorder %s21, 1
      %p69 = por %p67, %p68
      %p70 = scmp.ne.s32.totalorder %s59, %s60
      %p71 = scmp.eq.s32.totalorder %s21, 0
      %p72 = por %p70, %p71
      %p73 = scmp.ne.s32.totalorder %s59, %s60
      %p74 = scmp.eq.s32.totalorder %s22, 1
      %p75 = por %p73, %p74
      %p77 = scmp.ne.s32.totalorder %s60, %s76
      %p78 = scmp.eq.s32.totalorder %s22, 0
      %p79 = por %p77, %p78
      %s80 = ssub.s32 %s26, %s37
      %s81 = ssub.s32 %s25, %s41
      %s82 = sor.u32 %s80, %s81
      %p83 = scmp.eq.s32.totalorder %s82, 0
      %s85 = sadd.s32 %s84, 1
      %s86 = scalar_select %p83, %s84, %s85
      %p89 = pneg %p83
      %p90 = scmp.eq.s32.totalorder %s16, 1
      %p91 = por %p89, %p90
      %p92 = scmp.ne.s32.totalorder %s84, %s87
      %p93 = scmp.eq.s32.totalorder %s16, 0
      %p94 = por %p92, %p93
      %p95 = scmp.ne.s32.totalorder %s84, %s87
      %p96 = scmp.eq.s32.totalorder %s21, 1
      %p97 = por %p95, %p96
      %p98 = scmp.ne.s32.totalorder %s87, %s88
      %p99 = scmp.eq.s32.totalorder %s21, 0
      %p100 = por %p98, %p99
      %p101 = scmp.ne.s32.totalorder %s87, %s88
      %p102 = scmp.eq.s32.totalorder %s22, 1
      %p103 = por %p101, %p102
      %p105 = scmp.ne.s32.totalorder %s88, %s104
      %p106 = scmp.eq.s32.totalorder %s22, 0
      %p107 = por %p105, %p106
      %s108 = ssub.s32 %s25, %s41
      %p109 = scmp.eq.s32.totalorder %s108, 0
      %s111 = sadd.s32 %s110, 1
      %s112 = scalar_select %p109, %s110, %s111
      %p115 = pneg %p109
      %p116 = scmp.eq.s32.totalorder %s16, 1
      %p117 = por %p115, %p116
      %p118 = scmp.ne.s32.totalorder %s110, %s113
      %p119 = scmp.eq.s32.totalorder %s16, 0
      %p120 = por %p118, %p119
      %p121 = scmp.ne.s32.totalorder %s110, %s113
      %p122 = scmp.eq.s32.totalorder %s21, 1
      %p123 = por %p121, %p122
      %p124 = scmp.ne.s32.totalorder %s113, %s114
      %p125 = scmp.eq.s32.totalorder %s21, 0
      %p126 = por %p124, %p125
      %p127 = scmp.ne.s32.totalorder %s113, %s114
      %p128 = scmp.eq.s32.totalorder %s22, 1
      %p129 = por %p127, %p128
      %p131 = scmp.ne.s32.totalorder %s114, %s130
      %p132 = scmp.eq.s32.totalorder %s22, 0
      %p133 = por %p131, %p132
      %s134 = ssub.s32 %s24, %s45
      %s135 = ssub.s32 %s23, %s49
      %s136 = sor.u32 %s134, %s135
      %s137 = ssub.s32 %s25, %s41
      %s138 = sor.u32 %s136, %s137
      %p139 = scmp.eq.s32.totalorder %s138, 0
      %s141 = sadd.s32 %s140, 1
      %s142 = scalar_select %p139, %s140, %s141
      %p145 = pneg %p139
      %p146 = scmp.eq.s32.totalorder %s16, 1
      %p147 = por %p145, %p146
      %p148 = scmp.ne.s32.totalorder %s140, %s143
      %p149 = scmp.eq.s32.totalorder %s16, 0
      %p150 = por %p148, %p149
      %p151 = scmp.ne.s32.totalorder %s140, %s143
      %p152 = scmp.eq.s32.totalorder %s21, 1
      %p153 = por %p151, %p152
      %p154 = scmp.ne.s32.totalorder %s143, %s144
      %p155 = scmp.eq.s32.totalorder %s21, 0
      %p156 = por %p154, %p155
      %p157 = scmp.ne.s32.totalorder %s143, %s144
      %p158 = scmp.eq.s32.totalorder %s22, 1
      %p159 = por %p157, %p158
      %p161 = scmp.ne.s32.totalorder %s144, %s160
      %p162 = scmp.eq.s32.totalorder %s22, 0
      %p163 = por %p161, %p162
      %p164 = scmp.le.s32.totalorder 1, %s16
      %p165 = scmp.lt.s32.totalorder %s16, 3
      %p166 = pnand %p164, %p165
      %p167 = pneg %p166
      // Predicated region
      $region9: #{tpu_custom_call.1} parent=5 // pred_check
        _
      $region10: #{tpu_custom_call.1} parent=5 // pred_check_branch
        %169 = sbr.rel (%p166) target = $region12
      $region11: #{tpu_custom_call.1} parent=5 // pred_region
        %s170 = ssub.s32 %s16, 1
        // Predicated region
        $region13: #{tpu_custom_call.1} parent=11 // pred_check
          %p171 = pneg %p100
        $region14: #{tpu_custom_call.1} parent=11 // pred_check_branch
          %173 = sbr.rel (%p171) target = $region16
        $region15: #{tpu_custom_call.1} parent=11 // pred_region
          %s174 = smul.u32 2, %s30
          %s175 = smul.u32 2, %s29
          %s177 = ssub.s32 256, 256
          %178 = vsyncadd [#allocation6], %s177
          %s179 = smul.addr %s174, 2
          %s180 = sadd.s32 %s175, %s179
          %s181 = smul.addr %s180, 64
          %s182 = scalar_lea.hbm %s1, %s181
          %s183 = sshll.u32 [#allocation5], 4
          %s184 = int_to_ptr.vmem [resolvable:$true] %s183
          %189 = dma.hbm_to_vmem [thread:$0]  %s182, 256, %s184, [#allocation6], 128, 128, 8
        $region16: #{tpu_custom_call.1} parent=11 // pred_fallthru
          _
        // Predicated region
        $region17: #{tpu_custom_call.1} parent=11 // pred_check
          %p190 = pneg %p126
        $region18: #{tpu_custom_call.1} parent=11 // pred_check_branch
          %192 = sbr.rel (%p190) target = $region20
        $region19: #{tpu_custom_call.1} parent=11 // pred_region
          %s193 = smul.u32 2, %s29
          %p194 = scmp.lt.s32.totalorder %s193, 1
          %s195 = scalar_select %p194, %s193, 1
          %s196 = scalar_lea.vmem %s2, %s195
          %s197 = smul.u32 2, %s29
        $region20: #{tpu_custom_call.1} parent=11 // pred_fallthru
          _
      $region12: #{tpu_custom_call.1} parent=5 // pred_fallthru
        _
      %p198 = scmp.lt.s32.totalorder %s16, 2
      // Predicated region
      $region21: #{tpu_custom_call.1} parent=5 // pred_check
        %p199 = pneg %p198
      $region22: #{tpu_custom_call.1} parent=5 // pred_check_branch
        %201 = sbr.rel (%p199) target = $region24
      $region23: #{tpu_custom_call.1} parent=5 // pred_region
        // Predicated region
        $region25: #{tpu_custom_call.1} parent=23 // pred_check
          %p202 = pneg %p66
        $region26: #{tpu_custom_call.1} parent=23 // pred_check_branch
          %204 = sbr.rel (%p202) target = $region28
        $region27: #{tpu_custom_call.1} parent=23 // pred_region
          %s205 = sand.u32 %s56, 1
          %s206 = scalar_lea.sflag [#allocation3], %s205
          %s207 = sand.u32 %s56, 1
          %s208 = smul.addr %s207, 8
          %s209 = scalar_lea.vmem [#allocation2], %s208
          %s210 = smul.u32 2, %s23
          %s212 = ssub.s32 128, 128
          %213 = vsyncadd %s206, %s212
          %s214 = sadd.s32 %s26, %s210
          %s215 = smul.addr %s24, 2
          %s216 = sadd.s32 %s214, %s215
          %s217 = smul.addr %s216, 64
          %s218 = scalar_lea.hbm %s0, %s217
          %s219 = sshll.u32 %s209, 4
          %s220 = int_to_ptr.vmem [resolvable:$true] %s219
          %225 = dma.hbm_to_vmem [thread:$0]  %s218, 128, %s220, %s206, 64, 64, 4
        $region28: #{tpu_custom_call.1} parent=23 // pred_fallthru
          _
      $region24: #{tpu_custom_call.1} parent=5 // pred_fallthru
        _
      %p226 = scmp.le.s32.totalorder 1, %s16
      %p227 = scmp.lt.s32.totalorder %s16, 3
      %p228 = pnand %p226, %p227
      %p229 = pneg %p228
      // Predicated region
      $region29: #{tpu_custom_call.1} parent=5 // pred_check
        _
      $region30: #{tpu_custom_call.1} parent=5 // pred_check_branch
        %231 = sbr.rel (%p228) target = $region32
      $region31: #{tpu_custom_call.1} parent=5 // pred_region
        %s232 = ssub.s32 %s16, 1
        %s233 = sand.u32 %s59, 1
        %s234 = scalar_lea.sflag [#allocation3], %s233
        %s235 = sand.u32 %s59, 1
        %s236 = smul.addr %s235, 8
        %s237 = scalar_lea.vmem [#allocation2], %s236
        // Predicated region
        $region33: #{tpu_custom_call.1} parent=31 // pred_check
          %p238 = pneg %p72
        $region34: #{tpu_custom_call.1} parent=31 // pred_check_branch
          %240 = sbr.rel (%p238) target = $region36
        $region35: #{tpu_custom_call.1} parent=31 // pred_region
          %241 = dma.done %s234, 128
        $region36: #{tpu_custom_call.1} parent=31 // pred_fallthru
          _
        // Predicated region
        $region37: #{tpu_custom_call.1} parent=31 // pred_check
          %p242 = pneg %p100
        $region38: #{tpu_custom_call.1} parent=31 // pred_check_branch
          %244 = sbr.rel (%p242) target = $region40
        $region39: #{tpu_custom_call.1} parent=31 // pred_region
          %245 = dma.done [#allocation6], 256
        $region40: #{tpu_custom_call.1} parent=31 // pred_fallthru
          _
        %s246 = sand.u32 %s59, 1
        %s247 = scalar_lea.sflag [#allocation3], %s246
        %s248 = sand.u32 %s59, 1
        %s249 = smul.addr %s248, 8
        %s250 = scalar_lea.vmem [#allocation2], %s249
        %p251 = pneg %p72
        %p252 = pneg %p69
        %p253 = pneg %p100
        %p254 = pneg %p97
        %s255 = smul.u32 2, %s29
        %p256 = scmp.lt.s32.totalorder %s255, 1
        %s257 = scalar_select %p256, %s255, 1
        %s258 = scalar_lea.vmem %s2, %s257
        %p259 = pneg %p126
        %p260 = pneg %p123
        %p261 = pneg %p156
        %p262 = pneg %p153
        %s263 = sand.u32 %s143, 1
        %s264 = scalar_lea.sflag [#allocation4], %s263
        %s265 = sand.u32 %s143, 1
        %s266 = smul.addr %s265, 16
        %s267 = scalar_lea.vmem [#allocation7], %s266
        %s268 = smul.u32 2, %s27
        %s269 = smul.u32 2, %s30
        %s270 = smul.u32 2, %s29
        %s271 = smul.u32 2, %s29
        %p272 = scmp.lt.s32.totalorder %s271, 1
        %s273 = scalar_select %p272, %s271, 1
        %s274 = scalar_lea.vmem %s2, %s273
        %s275 = smul.u32 2, %s29
        %s276 = smul.u32 2, %s27
        %s277 = smul.u32 2, %s29
        %v279 = vld [vmem:[%s237] sm:$0xf]
        %v280 = vld [vmem:[%s237 + $0x4] sm:$0xf]
        %v281 = vld [vmem:[#allocation5] sm:$0xff]
        %v282 = vld [vmem:[#allocation5 + $0x8] sm:$0xff]
        %v283 = vld [vmem:[%s274] sm:$0x3]
        %v285 = vlaneseq
        %v286 = vshrl.u32 %v285, 7
        %v287 = vsub.s32 0, %v286
        %v288 = vrot.slane %v283, %v287
        %v289 = vlaneseq
        %v290 = vshrl.u32 %v289, 7
        %v291 = vsub.s32 1, %v290
        %v292 = vrot.slane %v283, %v291
        %v297 = vunpack.c.l.b16 %v279
        %v298 = vunpack.c.l.b16 %v280
        %v299 = vpack.c.b16 %v298, %v297
        %v302 = vunpack.c.l.b16 %v281
        %v303 = vunpack.c.h.b16 %v281
        %v304 = vunpack.c.l.b16 %v282
        %v305 = vunpack.c.h.b16 %v282
        %v306 = vpack.c.b16 %v304, %v302
        %v307 = vpack.c.b16 %v305, %v303
        %vm310 = vcmask 130048
        %v312 = vsel %vm310, %v299, 0
        %314 = vmatprep.subr.bf16.mxu0 %v307
        %315 = vmatpush1.bf16.msra.mxu0 %v306
        %316 = vmatprep.subr.bf16.mxu0 0
        %317 = vmatpush1.bf16.msra.mxu0 0
        %318 = vmatprep.subr.bf16.mxu0 0
        %319 = vmatpush1.bf16.msra.mxu0 0
        %320 = vmatprep.subr.bf16.mxu0 0
        %321 = vmatpush1.bf16.msra.mxu0 0
        %322 = vmatprep.subr.bf16.mxu0 0
        %323 = vmatpush1.bf16.msra.mxu0 0
        %324 = vmatprep.subr.bf16.mxu0 0
        %325 = vmatpush1.bf16.msra.mxu0 0
        %326 = vmatprep.subr.bf16.mxu0 0
        %327 = vmatpush1.bf16.msra.mxu0 0
        %328 = vmatprep.subr.bf16.mxu0 0
        %329 = vmatpush1.bf16.msra.mxu0 0
        %330 = vmatprep.subr.bf16.mxu0 0
        %331 = vmatpush1.bf16.msra.mxu0 0
        %332 = vmatprep.subr.bf16.mxu0 0
        %333 = vmatpush1.bf16.msra.mxu0 0
        %334 = vmatprep.subr.bf16.mxu0 0
        %335 = vmatpush1.bf16.msra.mxu0 0
        %336 = vmatprep.subr.bf16.mxu0 0
        %337 = vmatpush1.bf16.msra.mxu0 0
        %338 = vmatprep.subr.bf16.mxu0 0
        %339 = vmatpush1.bf16.msra.mxu0 0
        %340 = vmatprep.subr.bf16.mxu0 0
        %341 = vmatpush1.bf16.msra.mxu0 0
        %342 = vmatprep.subr.bf16.mxu0 0
        %343 = vmatpush1.bf16.msra.mxu0 0
        %344 = vmatprep.subr.bf16.mxu0 0
        %345 = vmatpush1.bf16.msra.mxu0 0
        %346 = vmatprep.mubr.bf16.mxu0 0
        %347 = vmatmul.mubr.bf16.gmra.mrb[0].mxu0 %v312
        %v348 = vpop.f32.mrb[0].mxu0
        %v349 = vadd.f32 %v288, %v348
        %v350 = vpop.f32.mrb[0].mxu0
        %v351 = vadd.f32 %v292, %v350
        %v352 = vpop.f32.mrb[0].mxu0
        %v353 = vadd.f32 %v288, %v352
        %v354 = vpop.f32.mrb[0].mxu0
        %v355 = vadd.f32 %v292, %v354
        %356 = vdwg.mxu0
        %v357 = vpack.c.bf16 %v353, %v349
        %v358 = vpack.c.bf16 %v355, %v351
        %v361 = vunpack.c.l.b16 %v357
        %v362 = vunpack.c.l.b16 %v358
        %v363 = vunpack.c.h.b16 %v357
        %v364 = vunpack.c.h.b16 %v358
        %v365 = vpack.c.b16 %v362, %v361
        %v366 = vpack.c.b16 %v364, %v363
        %369 = vst [vmem:[%s267] sm:$0xff] %v365
        %370 = vst [vmem:[%s267 + $0x8] sm:$0xff] %v366
        %s371 = sand.u32 %s143, 1
        %s372 = scalar_lea.sflag [#allocation4], %s371
        %s373 = sand.u32 %s143, 1
        %s374 = smul.addr %s373, 16
        %s375 = scalar_lea.vmem [#allocation7], %s374
        // Predicated region
        $region41: #{tpu_custom_call.1} parent=31 // pred_check
          %p376 = pneg %p153
        $region42: #{tpu_custom_call.1} parent=31 // pred_check_branch
          %378 = sbr.rel (%p376) target = $region44
        $region43: #{tpu_custom_call.1} parent=31 // pred_region
          %s379 = smul.u32 2, %s27
          %s380 = smul.u32 2, %s29
          %s382 = ssub.s32 256, 256
          %383 = vsyncadd %s372, %s382
          %s384 = smul.addr %s379, 2
          %s385 = sadd.s32 %s380, %s384
          %s386 = smul.addr %s28, 4
          %s387 = sadd.s32 %s385, %s386
          %s388 = smul.addr %s387, 64
          %s389 = scalar_lea.hbm %s3, %s388
          %s390 = sshll.u32 %s375, 4
          %s391 = int_to_ptr.vmem [resolvable:$true] %s390
          %396 = dma.vmem_to_hbm [thread:$0]  %s391, 256, %s389, %s372, 128, 128, 8
        $region44: #{tpu_custom_call.1} parent=31 // pred_fallthru
          _
      $region32: #{tpu_custom_call.1} parent=5 // pred_fallthru
        _
      %p397 = scmp.le.s32.totalorder 2, %s16
      // Predicated region
      $region45: #{tpu_custom_call.1} parent=5 // pred_check
        %p398 = pneg %p397
      $region46: #{tpu_custom_call.1} parent=5 // pred_check_branch
        %400 = sbr.rel (%p398) target = $region48
      $region47: #{tpu_custom_call.1} parent=5 // pred_region
        %s401 = ssub.s32 %s16, 2
        // Predicated region
        $region49: #{tpu_custom_call.1} parent=47 // pred_check
          %p402 = pneg %p159
        $region50: #{tpu_custom_call.1} parent=47 // pred_check_branch
          %404 = sbr.rel (%p402) target = $region52
        $region51: #{tpu_custom_call.1} parent=47 // pred_region
          %s405 = sand.u32 %s144, 1
          %s406 = scalar_lea.sflag [#allocation4], %s405
          %s407 = sand.u32 %s144, 1
          %s408 = smul.addr %s407, 16
          %s409 = scalar_lea.vmem [#allocation7], %s408
          %410 = dma.done %s406, 256
        $region52: #{tpu_custom_call.1} parent=47 // pred_fallthru
          _
      $region48: #{tpu_custom_call.1} parent=5 // pred_fallthru
        _
    $region6: #{tpu_custom_call.1} parent=1 // loop_footer
      %s20 = sadd.s32 1, %s16
    $region7: #{tpu_custom_call.1} parent=1 // loop_footer_branch
      %15 = sbr.rel target = $region3
    $region8: #{tpu_custom_call.1} parent=1 // loop_exit
      _
    %411 = vsyncpa [#allocation3], 1
    %s412 = scalar_lea.sflag [#allocation3], 1
    %413 = vsyncpa %s412, 1
    %414 = vsyncpa [#allocation6], 1
    %415 = vsyncpa [#allocation4], 1
    %s416 = scalar_lea.sflag [#allocation4], 1
    %417 = vsyncpa %s416, 1

</llo_original>
